<compile_context>
chip_gen: v7x
topology: tpu7x:2x2x1
jax: 0.10.0
libtpu: 0.0.40
codegen_flags: <defaults>
</compile_context>

<pallas_src>
from functools import partial

import jax
import jax.numpy as jnp
from jax.experimental import pallas as pl
from jax.experimental.pallas import tpu as pltpu


def transition_kernel(x_ref, scale_ref, shift_ref, w_ref, o_ref):
    # x_ref:     (TILE_Q, 4*Cin)  pooled-pixel rows, window pixels blocked in lanes
    # scale_ref: (1, 4*Cin)       folded BN scale (tiled 4x over window positions)
    # shift_ref: (1, 4*Cin)       folded BN shift (tiled 4x)
    # w_ref:     (4*Cin, Cout)    0.25 * [w; w; w; w]  (conv + avg-pool fused)
    # o_ref:     (TILE_Q, Cout)
    # BatchNorm (folded affine) + ReLU on the VPU, in the compute dtype
    # (bf16 on v6e/v7x: packed vregs, no f32 temporaries).
    h = jnp.maximum(x_ref[...] * scale_ref[...] + shift_ref[...], 0)
    # conv1x1 + avgpool(2,2) as a single MXU matmul with f32 accumulation.
    o_ref[...] = jnp.dot(h, w_ref[...],
                         preferred_element_type=jnp.float32).astype(o_ref.dtype)


def _vmem_budget_bytes():
    """Generation-aware scoped-VMEM budget (~75% of per-core capacity)."""
    cap = None
    try:
        cap = getattr(pltpu.get_tpu_info(), "vmem_capacity_bytes", None)
    except Exception:
        cap = None
    if not cap:
        cap = 64 * 1024 * 1024        # conservative fallback: v7x per-TC VMEM
    return int(cap) * 3 // 4          # ~48 MiB on v7x, ~96 MiB on v5e/v6e


def _pick_tile_q(Q, C4, Cout, compute_itemsize, out_itemsize, budget_bytes):
    """Largest pooled-pixel tile whose *total* VMEM footprint fits the budget."""
    # Grid-invariant consumers: weight + scale + shift.  The default pipeline
    # double-buffers them (x2); ~1 MiB slack for Mosaic internal scratch.
    # TODO(synk): single-buffer the constant blocks via pipeline_mode=pl.Buffered(1)
    # once validated on all deployed jax versions; until then it is accounted for.
    fixed = 2 * (C4 * Cout + 2 * C4) * compute_itemsize + (1 << 20)
    # Per pooled-pixel row: double-buffered input + output tiles, the in-kernel
    # elementwise temporary (h) and the f32 matmul accumulator.
    per_row = (2 * C4 * compute_itemsize      # x tile, 2 pipeline buffers
               + 2 * Cout * out_itemsize      # out tile, 2 pipeline buffers
               + 2 * C4 * compute_itemsize    # h (+ slack for elementwise temps)
               + Cout * 4)                    # f32 MXU accumulator
    max_rows = max((budget_bytes - fixed) // per_row, 8)
    if max_rows >= Q or Q <= 8:
        return int(Q)                         # full extent is always legal
    if max_rows >= 128:                       # lane/MXU-cadence friendly tiles
        return int((max_rows // 128) * 128)
    return int((max_rows // 8) * 8)           # (8,128) sublane constraint


@partial(jax.jit, static_argnames=("eps", "mxu_dtype"))
def transition_forward(x_nchw, gamma, beta, conv_w, eps=1e-5,
                       mxu_dtype=jnp.bfloat16):
    """Transition.forward: (N, Cin, H, W) -> (N, Cout, H//2, W//2)."""
    N, Cin, H, W = x_nchw.shape
    Cout = conv_w.shape[0]
    Ho, Wo = H // 2, W // 2               # AvgPool2d(2,2) floor semantics
    Q = Ho * Wo
    C4 = 4 * Cin

    # --- BatchNorm2d training-mode batch stats (fused reductions under jit,
    #     no materialized f32 copy of x) ---
    mean = jnp.mean(x_nchw, axis=(0, 2, 3), dtype=jnp.float32)
    mean_sq = jnp.mean(jnp.square(x_nchw.astype(jnp.float32)), axis=(0, 2, 3))
    var = mean_sq - mean * mean           # biased variance (PyTorch fwd)
    inv = jax.lax.rsqrt(var + eps)
    scale = gamma.astype(jnp.float32) * inv
    shift = beta.astype(jnp.float32) - mean * scale
    scale4 = jnp.tile(scale, 4).reshape(1, C4).astype(mxu_dtype)
    shift4 = jnp.tile(shift, 4).reshape(1, C4).astype(mxu_dtype)

    # --- layout glue: NCHW -> (N, Ho, Wo, 2, 2, Cin) -> (N, Q, 4*Cin) ---
    x_crop = x_nchw[:, :, : 2 * Ho, : 2 * Wo]
    x_lay = jnp.transpose(
        x_crop.reshape(N, Cin, Ho, 2, Wo, 2), (0, 2, 4, 3, 5, 1)
    ).reshape(N, Q, C4).astype(mxu_dtype)

    # --- conv weight (Cout, Cin, 1, 1) -> (Cin, Cout), replicate 4x, fold 0.25 ---
    w2 = jnp.transpose(conv_w.reshape(Cout, Cin), (1, 0)).astype(jnp.float32)
    w4 = (0.25 * jnp.concatenate([w2, w2, w2, w2], axis=0)).astype(mxu_dtype)

    # --- tiling from a generation-aware, fully-accounted VMEM budget ---
    item = jnp.dtype(mxu_dtype).itemsize
    budget = _vmem_budget_bytes()
    tile_q = _pick_tile_q(Q, C4, Cout, item, item, budget)
    grid = (N, pl.cdiv(Q, tile_q))        # partial last tile handled by Pallas

    # NOTE: real DenseNet transitions have Cin/Cout multiples of 128 (lane-dense
    # unmasked stores, full MXU); for odd deployments pad Cout to 128 in w4/out
    # and slice in the wrapper.  The toy test shapes underutilize lanes by design.
    out_flat = pl.pallas_call(
        transition_kernel,
        out_shape=jax.ShapeDtypeStruct((N, Q, Cout), mxu_dtype),
        grid_spec=pltpu.PrefetchScalarGridSpec(
            num_scalar_prefetch=0,
            grid=grid,
            in_specs=[
                pl.BlockSpec((None, tile_q, C4), lambda n, t: (n, t, 0)),
                pl.BlockSpec((1, C4), lambda n, t: (0, 0)),
                pl.BlockSpec((1, C4), lambda n, t: (0, 0)),
                pl.BlockSpec((C4, Cout), lambda n, t: (0, 0)),
            ],
            out_specs=pl.BlockSpec((None, tile_q, Cout), lambda n, t: (n, t, 0)),
        ),
        compiler_params=pltpu.CompilerParams(
            dimension_semantics=("parallel", "parallel"),
            vmem_limit_bytes=budget,
        ),
    )(x_lay, scale4, shift4, w4)

    # (N, Q, Cout) -> (N, Ho, Wo, Cout) -> NCHW; transpose + cast fuse under jit.
    out = jnp.transpose(out_flat.reshape(N, Ho, Wo, Cout), (0, 3, 1, 2))
    return out.astype(x_nchw.dtype)


def transition_reference(x_nchw, gamma, beta, conv_w, eps=1e-5):
    """Pure-JAX NCHW reference matching PyTorch semantics."""
    mean = jnp.mean(x_nchw, axis=(0, 2, 3), keepdims=True)
    var = jnp.mean((x_nchw - mean) ** 2, axis=(0, 2, 3), keepdims=True)
    h = (x_nchw - mean) * jax.lax.rsqrt(var + eps)
    h = h * gamma[None, :, None, None] + beta[None, :, None, None]
    h = jnp.maximum(h, 0.0)
    w2d = conv_w.reshape(conv_w.shape[0], conv_w.shape[1])
    y = jnp.einsum("nchw,oc->nohw", h, w2d)
    N, Co, H, W = y.shape
    return y.reshape(N, Co, H // 2, 2, W // 2, 2).mean(axis=(3, 5))


if __name__ == "__main__":
    key = jax.random.PRNGKey(0)
    k1, k2, k3, k4 = jax.random.split(key, 4)

    N, Cin, H, W = 2, 4, 16, 16
    Cout = 8

    x = jax.random.normal(k1, (N, Cin, H, W), jnp.float32)
    gamma = 1.0 + 0.1 * jax.random.normal(k2, (Cin,), jnp.float32)
    beta = 0.1 * jax.random.normal(k3, (Cin,), jnp.float32)
    conv_w = jax.random.normal(k4, (Cout, Cin, 1, 1), jnp.float32) / jnp.sqrt(Cin)

    ref = transition_reference(x, gamma, beta, conv_w)

    # Exact-precision path (f32 compute/output): tight check against the reference.
    out_f32 = jax.block_until_ready(
        transition_forward(x, gamma, beta, conv_w, mxu_dtype=jnp.float32))
    assert out_f32.shape == (N, Cout, H // 2, W // 2), out_f32.shape
    assert jnp.allclose(out_f32, ref, atol=1e-4, rtol=1e-4), \
        float(jnp.abs(out_f32 - ref).max())

    # Fast path (bf16 elementwise + bf16 MXU operands + bf16 output, f32 accum).
    out_bf16 = jax.block_until_ready(
        transition_forward(x, gamma, beta, conv_w, mxu_dtype=jnp.bfloat16))
    assert out_bf16.shape == (N, Cout, H // 2, W // 2), out_bf16.shape
    assert jnp.allclose(out_bf16, ref, atol=1e-1, rtol=1e-1), \
        float(jnp.abs(out_bf16 - ref).max())

    print("KERNEL_OK")
</pallas_src>

<mosaic_0001>
module attributes {stable_mosaic.version = 11 : i64} {
  func.func @transition_kernel(%arg0: i32, %arg1: i32, %arg2: memref<1x64x16xf32, #tpu.memory_space<vmem>>, %arg3: memref<1x16xf32, #tpu.memory_space<vmem>>, %arg4: memref<1x16xf32, #tpu.memory_space<vmem>>, %arg5: memref<16x8xf32, #tpu.memory_space<vmem>>, %arg6: memref<1x64x8xf32, #tpu.memory_space<vmem>>) attributes {dimension_semantics = [#tpu.dimension_semantics<parallel>, #tpu.dimension_semantics<parallel>], iteration_bounds = array<i64: 2, 1>, scalar_prefetch = 0 : i64, scratch_operands = 0 : i64, tpu.core_type = #tpu.core_type<tc>, window_params = [{transform_indices = @transform_0, window_bounds = array<i64: 1, 64, 16>}, {pipeline_mode = #tpu.pipeline_mode<synchronous>, transform_indices = @transform_1, window_bounds = array<i64: 1, 16>}, {pipeline_mode = #tpu.pipeline_mode<synchronous>, transform_indices = @transform_2, window_bounds = array<i64: 1, 16>}, {pipeline_mode = #tpu.pipeline_mode<synchronous>, transform_indices = @transform_3, window_bounds = array<i64: 16, 8>}, {transform_indices = @transform_4, window_bounds = array<i64: 1, 64, 8>}]} {
    %c0 = arith.constant 0 : index
    %c0_0 = arith.constant 0 : index
    %c0_1 = arith.constant 0 : index
    %0 = vector.load %arg2[%c0, %c0_0, %c0_1] : memref<1x64x16xf32, #tpu.memory_space<vmem>>, vector<1x64x16xf32>
    %1 = vector.shape_cast %0 : vector<1x64x16xf32> to vector<64x16xf32>
    %c0_2 = arith.constant 0 : index
    %c0_3 = arith.constant 0 : index
    %2 = vector.load %arg3[%c0_2, %c0_3] : memref<1x16xf32, #tpu.memory_space<vmem>>, vector<1x16xf32>
    %3 = vector.broadcast %2 : vector<1x16xf32> to vector<64x16xf32>
    %4 = arith.mulf %1, %3 : vector<64x16xf32>
    %c0_4 = arith.constant 0 : index
    %c0_5 = arith.constant 0 : index
    %5 = vector.load %arg4[%c0_4, %c0_5] : memref<1x16xf32, #tpu.memory_space<vmem>>, vector<1x16xf32>
    %6 = vector.broadcast %5 : vector<1x16xf32> to vector<64x16xf32>
    %7 = arith.addf %4, %6 : vector<64x16xf32>
    %cst = arith.constant 0.000000e+00 : f32
    %8 = vector.broadcast %cst : f32 to vector<64x16xf32>
    %9 = arith.maximumf %7, %8 : vector<64x16xf32>
    %c0_6 = arith.constant 0 : index
    %c0_7 = arith.constant 0 : index
    %10 = vector.load %arg5[%c0_6, %c0_7] : memref<16x8xf32, #tpu.memory_space<vmem>>, vector<16x8xf32>
    %cst_8 = arith.constant dense<0.000000e+00> : vector<64x8xf32>
    %11 = tpu.matmul %9, %10, %cst_8 {dimension_numbers = #tpu.dot_dimension_numbers<[1], [0], [0], [1], [0, 0, 1, 1], [], []>} : vector<64x16xf32>, vector<16x8xf32>, vector<64x8xf32> -> vector<64x8xf32>
    %c0_9 = arith.constant 0 : index
    %c0_10 = arith.constant 0 : index
    %c0_11 = arith.constant 0 : index
    %12 = vector.load %arg6[%c0_9, %c0_10, %c0_11] : memref<1x64x8xf32, #tpu.memory_space<vmem>>, vector<1x64x8xf32>
    %13 = vector.shape_cast %12 : vector<1x64x8xf32> to vector<64x8xf32>
    %14 = vector.shape_cast %11 : vector<64x8xf32> to vector<1x64x8xf32>
    tpu.vector_store %arg6[%c0_9, %c0_10, %c0_11], %14 {strides = array<i32>} : memref<1x64x8xf32, #tpu.memory_space<vmem>>, vector<1x64x8xf32>,
    return
  }
  func.func @transform_0(%arg0: i32, %arg1: i32) -> (i32, i32, i32) {
    %c0_i32 = arith.constant 0 : i32
    %c0_i32_0 = arith.constant 0 : i32
    return %arg0, %arg1, %c0_i32 : i32, i32, i32
  }
  func.func @transform_1(%arg0: i32, %arg1: i32) -> (i32, i32) {
    %c0_i32 = arith.constant 0 : i32
    %c0_i32_0 = arith.constant 0 : i32
    %c0_i32_1 = arith.constant 0 : i32
    return %c0_i32, %c0_i32_0 : i32, i32
  }
  func.func @transform_2(%arg0: i32, %arg1: i32) -> (i32, i32) {
    %c0_i32 = arith.constant 0 : i32
    %c0_i32_0 = arith.constant 0 : i32
    %c0_i32_1 = arith.constant 0 : i32
    return %c0_i32, %c0_i32_0 : i32, i32
  }
  func.func @transform_3(%arg0: i32, %arg1: i32) -> (i32, i32) {
    %c0_i32 = arith.constant 0 : i32
    %c0_i32_0 = arith.constant 0 : i32
    %c0_i32_1 = arith.constant 0 : i32
    return %c0_i32, %c0_i32_0 : i32, i32
  }
  func.func @transform_4(%arg0: i32, %arg1: i32) -> (i32, i32, i32) {
    %c0_i32 = arith.constant 0 : i32
    %c0_i32_0 = arith.constant 0 : i32
    return %arg0, %arg1, %c0_i32 : i32, i32, i32
  }
}

</mosaic_0001>

<llo_original>
// kernel: tile.13
$region0: #{tile.13}
  #allocation0 [shape = 's32[1]{0}', space=sflag, size = 0x4, scoped, tag = 'scoped memory for tile.13']
  %s0 = inlined_call_operand.vmem [shape: f32[4], index: 0, kind: input, shape index: {}]
  %s1 = inlined_call_operand.vmem [shape: f32[4,4], index: 1, kind: output, shape index: {}]
  // Predicated region
  $region2: #{tile.13} parent=0 // pred_check
    _
  $region3: #{tile.13} parent=0 // pred_check_branch
    %3 = sbr.rel (0) target = $region5
  $region4: #{tile.13} parent=0 // pred_region
    _
  $region5: #{tile.13} parent=0 // pred_fallthru
    _
  %v4 = vld [vmem:[%s0] ss:$0 sm:$0xff]
  %5 = vst [vmem:[%s1] sm:$0xf] %v4

// kernel: tile.14
$region0: #{tile.14}
  %s0 = inlined_call_operand.vmem [shape: f32[4,4], index: 0, kind: input, shape index: {}]
  %s1 = inlined_call_operand.vmem [shape: f32[1,16], index: 1, kind: output, shape index: {}]
  $region1: #{tile.14} parent=0
    #allocation0 [shape = 'u8[4096]{0}', space=vmem, size = 0x1000, scoped, tag = 'scoped mem for output reshape']
    #allocation1 [shape = 'u8[4096]{0}', space=vmem, size = 0x1000, scoped, tag = 'scoped mem for input reshape']
    %s3 = sshllo.u32 0, 4
    %v4 = vld [vmem:[%s0] sm:%s3]
    %5 = vst [vmem:[#allocation1] sm:%s3] %v4
    %v6 = vld [vmem:[#allocation1] sm:$0x1]
    %vm7 = vcmask 31744
    %8 = vst.msk [vmem:[#allocation0] sm:$0x1] %vm7, %v6
    %s9 = scalar_lea.vmem [#allocation1], 3
    %v10 = vld [vmem:[%s9] sm:$0x1]
    %11 = vrot.lane.b32.xlu0 %v10, 12
    %v12 = vpop.permute.xlu0 %11
    %vm13 = vcmask 130144
    %14 = vst.msk [vmem:[#allocation0] sm:$0x1] %vm13, %v12
    %s15 = scalar_lea.vmem [#allocation1], 2
    %v16 = vld [vmem:[%s15] sm:$0x1]
    %17 = vrot.lane.b32.xlu0 %v16, 8
    %v18 = vpop.permute.xlu0 %17
    %vm19 = vcmask 97344
    %20 = vst.msk [vmem:[#allocation0] sm:$0x1] %vm19, %v18
    %s21 = scalar_lea.vmem [#allocation1], 1
    %v22 = vld [vmem:[%s21] sm:$0x1]
    %23 = vrot.lane.b32.xlu0 %v22, 4
    %v24 = vpop.permute.xlu0 %23
    %vm25 = vcmask 64544
    %26 = vst.msk [vmem:[#allocation0] sm:$0x1] %vm25, %v24
    %s28 = sshllo.u32 0, 1
    %v30 = vld [vmem:[#allocation0] sm:%s28]
    %s31 = sshllo.u32 0, 1
    %32 = vst [vmem:[%s1] sm:%s31] %v30

// kernel: transition_forward.1
$region0: #{transition_forward.1}
  #allocation0 [shape = 'u32[]', space=smem, size = 0x4, offset = 0x4, fixed_abs, tag = 'smem constant byte address 0x4 - core index']
  #allocation1 [shape = 'u32[144,128]{1,0:T(1,128)}', space=vmem, size = 0x12000, scoped, tag = 'internal scratch']
  %s0 = inlined_call_operand.vmem [shape: f32[2,64,16], index: 0, kind: input, shape index: {}]
  %s1 = inlined_call_operand.vmem [shape: f32[1,16], index: 1, kind: input, shape index: {}]
  %s2 = inlined_call_operand.vmem [shape: f32[1,16], index: 2, kind: input, shape index: {}]
  %s3 = inlined_call_operand.vmem [shape: f32[16,8], index: 3, kind: input, shape index: {}]
  %s4 = inlined_call_operand.vmem [shape: f32[2,64,8], index: 4, kind: output, shape index: {}]
  %s5 = sld [smem:[#allocation0]]
  $region49: #{transition_forward.1} parent=0
    _
  %s7 = ssub.s32 1, %s5
  %s8 = scalar_select 0, %s7, %s5
  loop: start=0, step=1, limit=4
  $region2: #{transition_forward.1} parent=0 // loop_pre_header
    _
  $region3: #{transition_forward.1} parent=0 // loop_header
    %s10 = sphi 0, %s14
    %p11 = scmp.ge.s32.totalorder %s10, 4
    %s17 = sphi 0, %s29
    %s18 = sphi 0, %s25
    %s19 = sphi 0, %s17
    %s20 = sphi 0, %s18
    %s21 = sphi 0, %s19
    %s22 = sphi 0, %s20
    %s34 = sphi 0, %s36
    %s37 = sphi 0, %s34
    %s38 = sphi 0, %s37
    %s54 = sphi 0, %s38
    %s58 = sphi 0, %s58
    %s60 = sphi 0, %s58
    %s61 = sphi 0, %s60
    %s75 = sphi 0, %s61
    %s79 = sphi 0, %s79
    %s81 = sphi 0, %s79
    %s82 = sphi 0, %s81
    %s96 = sphi 0, %s82
    %s100 = sphi 0, %s100
    %s102 = sphi 0, %s100
    %s103 = sphi 0, %s102
    %s117 = sphi 0, %s103
    %s125 = sphi 0, %s127
    %s128 = sphi 0, %s125
    %s129 = sphi 0, %s128
    %s145 = sphi 0, %s129
  $region4: #{transition_forward.1} parent=0 // loop_header_branch
    %13 = sbr.rel (%p11) target = $region8
  $region5: #{transition_forward.1} parent=0 // loop_body
    %s15 = ssub.s32 %s10, 1
    %s16 = ssub.s32 %s10, 2
    %s23 = sadd.s32 1, %s18
    %p24 = scmp.ge.s32.totalorder %s23, 1
    %s25 = scalar_select %p24, 0, %s23
    %s26 = sadd.s32 1, %s17
    %s27 = scalar_select %p24, %s26, %s17
    %p28 = scmp.ge.s32.totalorder %s27, 2
    %s29 = scalar_select %p28, 0, %s27
    %s30 = ssub.s32 %s17, %s29
    %s31 = ssub.s32 %s18, %s25
    %s32 = sor.u32 %s30, %s31
    %p33 = scmp.eq.s32.totalorder %s32, 0
    %s35 = sadd.s32 %s34, 1
    %s36 = scalar_select %p33, %s34, %s35
    %p39 = pneg %p33
    %p40 = scmp.eq.s32.totalorder %s10, 1
    %p41 = por %p39, %p40
    %p42 = scmp.ne.s32.totalorder %s34, %s37
    %p43 = scmp.eq.s32.totalorder %s10, 0
    %p44 = por %p42, %p43
    %p45 = scmp.ne.s32.totalorder %s34, %s37
    %p46 = scmp.eq.s32.totalorder %s15, 1
    %p47 = por %p45, %p46
    %p48 = scmp.ne.s32.totalorder %s37, %s38
    %p49 = scmp.eq.s32.totalorder %s15, 0
    %p50 = por %p48, %p49
    %p51 = scmp.ne.s32.totalorder %s37, %s38
    %p52 = scmp.eq.s32.totalorder %s16, 1
    %p53 = por %p51, %p52
    %p55 = scmp.ne.s32.totalorder %s38, %s54
    %p56 = scmp.eq.s32.totalorder %s16, 0
    %p57 = por %p55, %p56
    %s59 = sadd.s32 %s58, 1
    %p62 = scmp.eq.s32.totalorder %s10, 1
    %p63 = scmp.ne.s32.totalorder %s58, %s60
    %p64 = scmp.eq.s32.totalorder %s10, 0
    %p65 = por %p63, %p64
    %p66 = scmp.ne.s32.totalorder %s58, %s60
    %p67 = scmp.eq.s32.totalorder %s15, 1
    %p68 = por %p66, %p67
    %p69 = scmp.ne.s32.totalorder %s60, %s61
    %p70 = scmp.eq.s32.totalorder %s15, 0
    %p71 = por %p69, %p70
    %p72 = scmp.ne.s32.totalorder %s60, %s61
    %p73 = scmp.eq.s32.totalorder %s16, 1
    %p74 = por %p72, %p73
    %p76 = scmp.ne.s32.totalorder %s61, %s75
    %p77 = scmp.eq.s32.totalorder %s16, 0
    %p78 = por %p76, %p77
    %s80 = sadd.s32 %s79, 1
    %p83 = scmp.eq.s32.totalorder %s10, 1
    %p84 = scmp.ne.s32.totalorder %s79, %s81
    %p85 = scmp.eq.s32.totalorder %s10, 0
    %p86 = por %p84, %p85
    %p87 = scmp.ne.s32.totalorder %s79, %s81
    %p88 = scmp.eq.s32.totalorder %s15, 1
    %p89 = por %p87, %p88
    %p90 = scmp.ne.s32.totalorder %s81, %s82
    %p91 = scmp.eq.s32.totalorder %s15, 0
    %p92 = por %p90, %p91
    %p93 = scmp.ne.s32.totalorder %s81, %s82
    %p94 = scmp.eq.s32.totalorder %s16, 1
    %p95 = por %p93, %p94
    %p97 = scmp.ne.s32.totalorder %s82, %s96
    %p98 = scmp.eq.s32.totalorder %s16, 0
    %p99 = por %p97, %p98
    %s101 = sadd.s32 %s100, 1
    %p104 = scmp.eq.s32.totalorder %s10, 1
    %p105 = scmp.ne.s32.totalorder %s100, %s102
    %p106 = scmp.eq.s32.totalorder %s10, 0
    %p107 = por %p105, %p106
    %p108 = scmp.ne.s32.totalorder %s100, %s102
    %p109 = scmp.eq.s32.totalorder %s15, 1
    %p110 = por %p108, %p109
    %p111 = scmp.ne.s32.totalorder %s102, %s103
    %p112 = scmp.eq.s32.totalorder %s15, 0
    %p113 = por %p111, %p112
    %p114 = scmp.ne.s32.totalorder %s102, %s103
    %p115 = scmp.eq.s32.totalorder %s16, 1
    %p116 = por %p114, %p115
    %p118 = scmp.ne.s32.totalorder %s103, %s117
    %p119 = scmp.eq.s32.totalorder %s16, 0
    %p120 = por %p118, %p119
    %s121 = ssub.s32 %s17, %s29
    %s122 = ssub.s32 %s18, %s25
    %s123 = sor.u32 %s121, %s122
    %p124 = scmp.eq.s32.totalorder %s123, 0
    %s126 = sadd.s32 %s125, 1
    %s127 = scalar_select %p124, %s125, %s126
    %p130 = pneg %p124
    %p131 = scmp.eq.s32.totalorder %s10, 1
    %p132 = por %p130, %p131
    %p133 = scmp.ne.s32.totalorder %s125, %s128
    %p134 = scmp.eq.s32.totalorder %s10, 0
    %p135 = por %p133, %p134
    %p136 = scmp.ne.s32.totalorder %s125, %s128
    %p137 = scmp.eq.s32.totalorder %s15, 1
    %p138 = por %p136, %p137
    %p139 = scmp.ne.s32.totalorder %s128, %s129
    %p140 = scmp.eq.s32.totalorder %s15, 0
    %p141 = por %p139, %p140
    %p142 = scmp.ne.s32.totalorder %s128, %s129
    %p143 = scmp.eq.s32.totalorder %s16, 1
    %p144 = por %p142, %p143
    %p146 = scmp.ne.s32.totalorder %s129, %s145
    %p147 = scmp.eq.s32.totalorder %s16, 0
    %p148 = por %p146, %p147
    %p149 = scmp.le.s32.totalorder 1, %s10
    %p150 = scmp.lt.s32.totalorder %s10, 3
    %p151 = pnand %p149, %p150
    %p152 = pneg %p151
    // Predicated region
    $region9: #{transition_forward.1} parent=5 // pred_check
      _
    $region10: #{transition_forward.1} parent=5 // pred_check_branch
      %154 = sbr.rel (%p151) target = $region12
    $region11: #{transition_forward.1} parent=5 // pred_region
      %s155 = ssub.s32 %s10, 1
      // Predicated region
      $region13: #{transition_forward.1} parent=11 // pred_check
        %p156 = pneg %p71
      $region14: #{transition_forward.1} parent=11 // pred_check_branch
        %158 = sbr.rel (%p156) target = $region16
      $region15: #{transition_forward.1} parent=11 // pred_region
        _
      $region16: #{transition_forward.1} parent=11 // pred_fallthru
        _
      // Predicated region
      $region17: #{transition_forward.1} parent=11 // pred_check
        %p159 = pneg %p92
      $region18: #{transition_forward.1} parent=11 // pred_check_branch
        %161 = sbr.rel (%p159) target = $region20
      $region19: #{transition_forward.1} parent=11 // pred_region
        _
      $region20: #{transition_forward.1} parent=11 // pred_fallthru
        _
      // Predicated region
      $region21: #{transition_forward.1} parent=11 // pred_check
        %p162 = pneg %p113
      $region22: #{transition_forward.1} parent=11 // pred_check_branch
        %164 = sbr.rel (%p162) target = $region24
      $region23: #{transition_forward.1} parent=11 // pred_region
        _
      $region24: #{transition_forward.1} parent=11 // pred_fallthru
        _
    $region12: #{transition_forward.1} parent=5 // pred_fallthru
      _
    %p165 = scmp.lt.s32.totalorder %s10, 2
    // Predicated region
    $region25: #{transition_forward.1} parent=5 // pred_check
      %p166 = pneg %p165
    $region26: #{transition_forward.1} parent=5 // pred_check_branch
      %168 = sbr.rel (%p166) target = $region28
    $region27: #{transition_forward.1} parent=5 // pred_region
      // Predicated region
      $region29: #{transition_forward.1} parent=27 // pred_check
        %p169 = pneg %p44
      $region30: #{transition_forward.1} parent=27 // pred_check_branch
        %171 = sbr.rel (%p169) target = $region32
      $region31: #{transition_forward.1} parent=27 // pred_region
        %s172 = smul.u32 8, %s18
        %p173 = scmp.lt.s32.totalorder %s17, 1
        %s174 = scalar_select %p173, %s17, 1
        %p175 = scmp.lt.s32.totalorder %s172, 7
        %s176 = scalar_select %p175, %s172, 7
        %s177 = smul.addr %s174, 8
        %s178 = sadd.s32 %s176, %s177
        %s179 = smul.addr %s178, 8
        %s180 = scalar_lea.vmem %s0, %s179
        %s181 = smul.u32 8, %s18
      $region32: #{transition_forward.1} parent=27 // pred_fallthru
        _
    $region28: #{transition_forward.1} parent=5 // pred_fallthru
      _
    %p182 = scmp.le.s32.totalorder 1, %s10
    %p183 = scmp.lt.s32.totalorder %s10, 3
    %p184 = pnand %p182, %p183
    %p185 = pneg %p184
    // Predicated region
    $region33: #{transition_forward.1} parent=5 // pred_check
      _
    $region34: #{transition_forward.1} parent=5 // pred_check_branch
      %187 = sbr.rel (%p184) target = $region36
    $region35: #{transition_forward.1} parent=5 // pred_region
      %s188 = ssub.s32 %s10, 1
      %s189 = smul.u32 8, %s20
      %p190 = scmp.lt.s32.totalorder %s19, 1
      %s191 = scalar_select %p190, %s19, 1
      %p192 = scmp.lt.s32.totalorder %s189, 7
      %s193 = scalar_select %p192, %s189, 7
      %s194 = smul.addr %s191, 8
      %s195 = sadd.s32 %s193, %s194
      %s196 = smul.addr %s195, 8
      %s197 = scalar_lea.vmem %s0, %s196
      %p198 = pneg %p50
      %p199 = pneg %p47
      %p200 = pneg %p71
      %p201 = pneg %p68
      %p202 = pneg %p92
      %p203 = pneg %p89
      %p204 = pneg %p113
      %p205 = pneg %p110
      %p206 = pneg %p141
      %p207 = pneg %p138
      %s208 = smul.u32 8, %s20
      %p209 = scmp.lt.s32.totalorder %s19, 1
      %s210 = scalar_select %p209, %s19, 1
      %p211 = scmp.lt.s32.totalorder %s208, 7
      %s212 = scalar_select %p211, %s208, 7
      %s213 = smul.addr %s210, 8
      %s214 = sadd.s32 %s212, %s213
      %s215 = smul.addr %s214, 8
      %s216 = scalar_lea.vmem %s4, %s215
      %s217 = smul.u32 8, %s20
      %p218 = scmp.lt.s32.totalorder %s19, 1
      %s219 = scalar_select %p218, %s19, 1
      %p220 = scmp.lt.s32.totalorder %s217, 7
      %s221 = scalar_select %p220, %s217, 7
      %s222 = smul.addr %s219, 8
      %s223 = sadd.s32 %s221, %s222
      %s224 = smul.addr %s223, 8
      %s225 = scalar_lea.vmem %s0, %s224
      %s226 = smul.u32 8, %s20
      %s227 = smul.u32 8, %s20
      %p228 = scmp.lt.s32.totalorder %s19, 1
      %s229 = scalar_select %p228, %s19, 1
      %p230 = scmp.lt.s32.totalorder %s227, 7
      %s231 = scalar_select %p230, %s227, 7
      %s232 = smul.addr %s229, 8
      %s233 = sadd.s32 %s231, %s232
      %s234 = smul.addr %s233, 8
      %s235 = scalar_lea.vmem %s4, %s234
      %s236 = smul.u32 8, %s20
      %v237 = vld [vmem:[%s225] sm:$0xff]
      %v238 = vld [vmem:[%s225 + $0x8] sm:$0xff]
      %v239 = vld [vmem:[%s225 + $0x10] sm:$0xff]
      %v240 = vld [vmem:[%s225 + $0x18] sm:$0xff]
      %v241 = vld [vmem:[%s225 + $0x20] sm:$0xff]
      %v242 = vld [vmem:[%s225 + $0x28] sm:$0xff]
      %v243 = vld [vmem:[%s225 + $0x30] sm:$0xff]
      %v244 = vld [vmem:[%s225 + $0x38] sm:$0xff]
      %v245 = vld [vmem:[%s1] sm:$0x1]
      %v247 = vlaneseq
      %v248 = vshrl.u32 %v247, 7
      %v249 = vsub.s32 0, %v248
      %v250 = vrot.slane %v245, %v249
      %v252 = vmul.f32 %v237, %v250
      %v253 = vmul.f32 %v238, %v250
      %v254 = vmul.f32 %v239, %v250
      %v255 = vmul.f32 %v240, %v250
      %v256 = vmul.f32 %v241, %v250
      %v257 = vmul.f32 %v242, %v250
      %v258 = vmul.f32 %v243, %v250
      %v259 = vmul.f32 %v244, %v250
      %v260 = vld [vmem:[%s2] sm:$0x1]
      %v262 = vlaneseq
      %v263 = vshrl.u32 %v262, 7
      %v264 = vsub.s32 0, %v263
      %v265 = vrot.slane %v260, %v264
      %v267 = vadd.f32 %v252, %v265
      %v268 = vadd.f32 %v253, %v265
      %v269 = vadd.f32 %v254, %v265
      %v270 = vadd.f32 %v255, %v265
      %v271 = vadd.f32 %v256, %v265
      %v272 = vadd.f32 %v257, %v265
      %v273 = vadd.f32 %v258, %v265
      %v274 = vadd.f32 %v259, %v265
      %v275 = vmax.f32 %v267, 0.0
      %v276 = vmax.f32 %v268, 0.0
      %v277 = vmax.f32 %v269, 0.0
      %v278 = vmax.f32 %v270, 0.0
      %v279 = vmax.f32 %v271, 0.0
      %v280 = vmax.f32 %v272, 0.0
      %v281 = vmax.f32 %v273, 0.0
      %v282 = vmax.f32 %v274, 0.0
      %v283 = vld [vmem:[%s3] sm:$0xff]
      %v284 = vld [vmem:[%s3 + $0x8] sm:$0xff]
      %vm285 = vcmask 130048
      %v287 = vsel %vm285, %v275, 0
      %v290 = vsel %vm285, %v276, 0
      %v293 = vsel %vm285, %v277, 0
      %v296 = vsel %vm285, %v278, 0
      %v299 = vsel %vm285, %v279, 0
      %v302 = vsel %vm285, %v280, 0
      %v305 = vsel %vm285, %v281, 0
      %v308 = vsel %vm285, %v282, 0
      %310 = vmatprep.subr.mxu0 0.0
      %311 = vmatpush1.msra.mxu0 %v283
      %312 = vmatprep.subr.mxu0 0.0
      %313 = vmatpush1.msra.mxu0 %v284
      %314 = vmatprep.subr.mxu0 0.0
      %315 = vmatpush1.msra.mxu0 0.0
      %316 = vmatprep.subr.mxu0 0.0
      %317 = vmatpush1.msra.mxu0 0.0
      %318 = vmatprep.subr.mxu0 0.0
      %319 = vmatpush1.msra.mxu0 0.0
      %320 = vmatprep.subr.mxu0 0.0
      %321 = vmatpush1.msra.mxu0 0.0
      %322 = vmatprep.subr.mxu0 0.0
      %323 = vmatpush1.msra.mxu0 0.0
      %324 = vmatprep.subr.mxu0 0.0
      %325 = vmatpush1.msra.mxu0 0.0
      %326 = vmatprep.subr.mxu0 0.0
      %327 = vmatpush1.msra.mxu0 0.0
      %328 = vmatprep.subr.mxu0 0.0
      %329 = vmatpush1.msra.mxu0 0.0
      %330 = vmatprep.subr.mxu0 0.0
      %331 = vmatpush1.msra.mxu0 0.0
      %332 = vmatprep.subr.mxu0 0.0
      %333 = vmatpush1.msra.mxu0 0.0
      %334 = vmatprep.subr.mxu0 0.0
      %335 = vmatpush1.msra.mxu0 0.0
      %336 = vmatprep.subr.mxu0 0.0
      %337 = vmatpush1.msra.mxu0 0.0
      %338 = vmatprep.subr.mxu0 0.0
      %339 = vmatpush1.msra.mxu0 0.0
      %340 = vmatprep.subr.mxu0 0.0
      %341 = vmatpush1.msra.mxu0 0.0
      %342 = vmatprep.subr.mxu0 0.0
      %343 = vmatpush1.msra.mxu0 0.0
      %344 = vmatprep.subr.mxu0 0.0
      %345 = vmatpush1.msra.mxu0 0.0
      %346 = vmatprep.subr.mxu0 0.0
      %347 = vmatpush1.msra.mxu0 0.0
      %348 = vmatprep.subr.mxu0 0.0
      %349 = vmatpush1.msra.mxu0 0.0
      %350 = vmatprep.subr.mxu0 0.0
      %351 = vmatpush1.msra.mxu0 0.0
      %352 = vmatprep.subr.mxu0 0.0
      %353 = vmatpush1.msra.mxu0 0.0
      %354 = vmatprep.subr.mxu0 0.0
      %355 = vmatpush1.msra.mxu0 0.0
      %356 = vmatprep.subr.mxu0 0.0
      %357 = vmatpush1.msra.mxu0 0.0
      %358 = vmatprep.subr.mxu0 0.0
      %359 = vmatpush1.msra.mxu0 0.0
      %360 = vmatprep.subr.mxu0 0.0
      %361 = vmatpush1.msra.mxu0 0.0
      %362 = vmatprep.subr.mxu0 0.0
      %363 = vmatpush1.msra.mxu0 0.0
      %364 = vmatprep.subr.mxu0 0.0
      %365 = vmatpush1.msra.mxu0 0.0
      %366 = vmatprep.subr.mxu0 0.0
      %367 = vmatpush1.msra.mxu0 0.0
      %368 = vmatprep.subr.mxu0 0.0
      %369 = vmatpush1.msra.mxu0 0.0
      %370 = vmatprep.subr.mxu0 0.0
      %371 = vmatpush1.msra.mxu0 0.0
      %372 = vmatprep.subr.mxu0 0.0
      %373 = vmatpush1.msra.mxu0 0.0
      %374 = vmatprep.mubr.f32.mxu0 0.0
      %375 = vmatmul.mubr.f32.gmra.mrb[0].mxu0 %v287
      %v376 = vpop.f32.mrb[0].mxu0
      %v377 = vadd.f32 0.0, %v376
      %v378 = vpop.f32.mrb[0].mxu0
      %379 = vmatprep.mubr.f32.mxu0 0.0
      %380 = vmatmul.mubr.f32.gmra.mrb[0].mxu0 %v290
      %v381 = vpop.f32.mrb[0].mxu0
      %v382 = vadd.f32 0.0, %v381
      %v383 = vpop.f32.mrb[0].mxu0
      %384 = vmatprep.mubr.f32.mxu0 0.0
      %385 = vmatmul.mubr.f32.gmra.mrb[0].mxu0 %v293
      %v386 = vpop.f32.mrb[0].mxu0
      %v387 = vadd.f32 0.0, %v386
      %v388 = vpop.f32.mrb[0].mxu0
      %389 = vmatprep.mubr.f32.mxu0 0.0
      %390 = vmatmul.mubr.f32.gmra.mrb[0].mxu0 %v296
      %v391 = vpop.f32.mrb[0].mxu0
      %v392 = vadd.f32 0.0, %v391
      %v393 = vpop.f32.mrb[0].mxu0
      %394 = vmatprep.mubr.f32.mxu0 0.0
      %395 = vmatmul.mubr.f32.gmra.mrb[0].mxu0 %v299
      %v396 = vpop.f32.mrb[0].mxu0
      %v397 = vadd.f32 0.0, %v396
      %v398 = vpop.f32.mrb[0].mxu0
      %399 = vmatprep.mubr.f32.mxu0 0.0
      %400 = vmatmul.mubr.f32.gmra.mrb[0].mxu0 %v302
      %v401 = vpop.f32.mrb[0].mxu0
      %v402 = vadd.f32 0.0, %v401
      %v403 = vpop.f32.mrb[0].mxu0
      %404 = vmatprep.mubr.f32.mxu0 0.0
      %405 = vmatmul.mubr.f32.gmra.mrb[0].mxu0 %v305
      %v406 = vpop.f32.mrb[0].mxu0
      %v407 = vadd.f32 0.0, %v406
      %v408 = vpop.f32.mrb[0].mxu0
      %409 = vmatprep.mubr.f32.mxu0 0.0
      %410 = vmatmul.mubr.f32.gmra.mrb[0].mxu0 %v308
      %v411 = vpop.f32.mrb[0].mxu0
      %v412 = vadd.f32 0.0, %v411
      %v413 = vpop.f32.mrb[0].mxu0
      %414 = vdwg.mxu0
      %vm415 = vcmask 64512
      %416 = vst.msk [vmem:[%s235] sm:$0xff] %vm415, %v377
      %417 = vst.msk [vmem:[%s235 + $0x8] sm:$0xff] %vm415, %v382
      %418 = vst.msk [vmem:[%s235 + $0x10] sm:$0xff] %vm415, %v387
      %419 = vst.msk [vmem:[%s235 + $0x18] sm:$0xff] %vm415, %v392
      %420 = vst.msk [vmem:[%s235 + $0x20] sm:$0xff] %vm415, %v397
      %421 = vst.msk [vmem:[%s235 + $0x28] sm:$0xff] %vm415, %v402
      %422 = vst.msk [vmem:[%s235 + $0x30] sm:$0xff] %vm415, %v407
      %423 = vst.msk [vmem:[%s235 + $0x38] sm:$0xff] %vm415, %v412
      %s424 = smul.u32 8, %s20
      %p425 = scmp.lt.s32.totalorder %s19, 1
      %s426 = scalar_select %p425, %s19, 1
      %p427 = scmp.lt.s32.totalorder %s424, 7
      %s428 = scalar_select %p427, %s424, 7
      %s429 = smul.addr %s426, 8
      %s430 = sadd.s32 %s428, %s429
      %s431 = smul.addr %s430, 8
      %s432 = scalar_lea.vmem %s4, %s431
      // Predicated region
      $region37: #{transition_forward.1} parent=35 // pred_check
        %p433 = pneg %p138
      $region38: #{transition_forward.1} parent=35 // pred_check_branch
        %435 = sbr.rel (%p433) target = $region40
      $region39: #{transition_forward.1} parent=35 // pred_region
        %s436 = smul.u32 8, %s20
      $region40: #{transition_forward.1} parent=35 // pred_fallthru
        _
    $region36: #{transition_forward.1} parent=5 // pred_fallthru
      _
    %p437 = scmp.le.s32.totalorder 2, %s10
    // Predicated region
    $region41: #{transition_forward.1} parent=5 // pred_check
      %p438 = pneg %p437
    $region42: #{transition_forward.1} parent=5 // pred_check_branch
      %440 = sbr.rel (%p438) target = $region44
    $region43: #{transition_forward.1} parent=5 // pred_region
      %s441 = ssub.s32 %s10, 2
      // Predicated region
      $region45: #{transition_forward.1} parent=43 // pred_check
        %p442 = pneg %p144
      $region46: #{transition_forward.1} parent=43 // pred_check_branch
        %444 = sbr.rel (%p442) target = $region48
      $region47: #{transition_forward.1} parent=43 // pred_region
        %s445 = smul.u32 8, %s22
        %p446 = scmp.lt.s32.totalorder %s21, 1
        %s447 = scalar_select %p446, %s21, 1
        %p448 = scmp.lt.s32.totalorder %s445, 7
        %s449 = scalar_select %p448, %s445, 7
        %s450 = smul.addr %s447, 8
        %s451 = sadd.s32 %s449, %s450
        %s452 = smul.addr %s451, 8
        %s453 = scalar_lea.vmem %s4, %s452
      $region48: #{transition_forward.1} parent=43 // pred_fallthru
        _
    $region44: #{transition_forward.1} parent=5 // pred_fallthru
      _
  $region6: #{transition_forward.1} parent=0 // loop_footer
    %s14 = sadd.s32 1, %s10
  $region7: #{transition_forward.1} parent=0 // loop_footer_branch
    %9 = sbr.rel target = $region3
  $region8: #{transition_forward.1} parent=0 // loop_exit
    _

</llo_original>
